<compile_context>
chip_gen: v5e
topology: v5e:2x2
jax: 0.10.0
libtpu: 0.0.40
codegen_flags: <defaults>
</compile_context>

<pallas_src>
import jax
import jax.numpy as jnp
import numpy as np
from jax.experimental import pallas as pl
from jax.experimental.pallas import tpu as pltpu


def _round_up(x, m):
    return (x + m - 1) // m * m


def _pick_vmem_limit():
    """~3/4 of physical VMEM: 96 MiB on v5e/v6e (128 MiB), ~48 MiB on v7x (64 MiB)."""
    try:
        cap = int(pltpu.get_tpu_info().vmem_capacity_bytes)
    except Exception:
        cap = 64 * 1024 * 1024  # conservative (v7x-sized) fallback
    return int(min(cap * 3 // 4, 96 * 1024 * 1024))


def build_normalized_adjacency(edge_index, num_nodes, n_rows=None, n_cols=None):
    """Dense D^{-1/2}(A+I)D^{-1/2}, exactly PyG gcn_norm with edge_weight=1.

    Scatters directly into a zero (n_rows, n_cols) buffer so padding is fused
    into the build (no second O(N^2) copy pass)."""
    n_rows = num_nodes if n_rows is None else n_rows
    n_cols = num_nodes if n_cols is None else n_cols
    src, dst = edge_index[0], edge_index[1]
    loop = jnp.arange(num_nodes, dtype=src.dtype)
    src = jnp.concatenate([src, loop])
    dst = jnp.concatenate([dst, loop])
    w = jnp.ones(src.shape[0], dtype=jnp.float32)
    deg = jnp.zeros(num_nodes, dtype=jnp.float32).at[dst].add(w)
    deg_inv_sqrt = jnp.where(deg > 0, jax.lax.rsqrt(deg), 0.0)
    norm = deg_inv_sqrt[src] * w * deg_inv_sqrt[dst]
    # message flows src -> dst :  out[dst] += norm * xw[src]
    return jnp.zeros((n_rows, n_cols), jnp.float32).at[dst, src].add(norm)


# ---------------------------------------------------------------------------
# Kernel 1: XW = X @ W   (bf16 inputs, f32 MXU accumulate, bf16 output)
# ---------------------------------------------------------------------------
def _xw_kernel(x_ref, w_ref, o_ref):
    o_ref[...] = jnp.dot(
        x_ref[...], w_ref[...], preferred_element_type=jnp.float32
    ).astype(o_ref.dtype)


# ---------------------------------------------------------------------------
# Kernel 2: out = ReLU(A_bsr @ XW + b)  (block-sparse, output-resident acc)
# ---------------------------------------------------------------------------
def _agg_kernel(blk_ref, col_ref, nnz_ref, a_ref, xw_ref, b_ref, o_ref):
    # blk_ref / col_ref are consumed by the index_maps; only nnz is read here.
    del blk_ref, col_ref
    i = pl.program_id(0)
    k = pl.program_id(1)

    @pl.when(k == 0)
    def _init():
        o_ref[...] = jnp.zeros_like(o_ref)

    # Padded slots repeat the previous block index (no DMA) and are skipped.
    @pl.when(k < nnz_ref[i])
    def _accumulate():
        o_ref[...] += jnp.dot(
            a_ref[0], xw_ref[...], preferred_element_type=jnp.float32
        )

    @pl.when(k == pl.num_programs(1) - 1)
    def _epilogue():
        # bias + default activation (ReLU); Dropout(p=0) -> Identity
        o_ref[...] = jnp.maximum(o_ref[...] + b_ref[...], 0.0)


def gcn_conv_pallas(x, edge_index, w, b, *, tm=512, tk=512):
    """ReLU(D^{-1/2}(A+I)D^{-1/2} @ (x @ w) + b) via two Pallas TPU kernels."""
    n, f_in = x.shape
    f_out = w.shape[1]

    # Tile sizes (kept multiples of (8,128); clamped for tiny graphs).
    tm = min(tm, _round_up(n, 128))
    tk = min(tk, _round_up(n, 128))
    n_rows_p = _round_up(n, tm)        # A rows / output rows
    n_cols_p = _round_up(n, tk)        # A cols / XW rows (decoupled padding)
    f_in_p = _round_up(f_in, 128)
    f_out_p = _round_up(f_out, 128)
    n_rt = n_rows_p // tm
    n_ct = n_cols_p // tk

    vmem_limit = _pick_vmem_limit()

    # ---- normalized adjacency, scattered straight into the padded buffer ----
    a_pad = build_normalized_adjacency(edge_index, n, n_rows_p, n_cols_p)

    # ---- BSR-style block structure (host-side; graph structure is static) ----
    tiles = a_pad.reshape(n_rt, tm, n_ct, tk)
    blk_mask = np.asarray(jnp.any(tiles != 0, axis=(1, 3)))        # [n_rt, n_ct]
    nnz_np = blk_mask.sum(axis=1).astype(np.int32)                 # [n_rt]
    max_nnz = max(1, int(nnz_np.max()) if nnz_np.size else 1)

    blk_ids_np = np.zeros((n_rt, max_nnz), np.int32)
    col_ids_np = np.zeros((n_rt, max_nnz), np.int32)
    ptr = 0
    for i in range(n_rt):
        cols_i = np.nonzero(blk_mask[i])[0].astype(np.int32)
        c = cols_i.size
        if c:
            blk_ids_np[i, :c] = np.arange(ptr, ptr + c, dtype=np.int32)
            col_ids_np[i, :c] = cols_i
            blk_ids_np[i, c:] = ptr + c - 1    # repeat last valid -> DMA skipped
            col_ids_np[i, c:] = cols_i[-1]
            ptr += c

    rows_nz, cols_nz = np.nonzero(blk_mask)                        # row-major
    if rows_nz.size:
        a_blocks = tiles.transpose(0, 2, 1, 3)[
            rows_nz.astype(np.int32), cols_nz.astype(np.int32)
        ].astype(jnp.bfloat16)                                     # [nnz, tm, tk]
    else:  # degenerate (no edges, no nodes): keep shapes valid
        a_blocks = jnp.zeros((1, tm, tk), jnp.bfloat16)

    blk_ids = jnp.asarray(blk_ids_np)
    col_ids = jnp.asarray(col_ids_np)
    nnz = jnp.asarray(nnz_np)

    # ---- padded / bf16 operands (zero padding is exact) ----
    x_p = jnp.zeros((n_cols_p, f_in_p), jnp.bfloat16).at[:n, :f_in].set(
        x.astype(jnp.bfloat16))
    w_p = jnp.zeros((f_in_p, f_out_p), jnp.bfloat16).at[:f_in, :f_out].set(
        w.astype(jnp.bfloat16))
    b_p = jnp.zeros((1, f_out_p), jnp.float32).at[0, :f_out].set(
        b.astype(jnp.float32))

    # ---- step 1: XW = X @ W ----
    if f_in_p * f_out_p * 2 > vmem_limit // 4:
        # TODO(synk): tile f_out with a second grid axis for very wide layers;
        # the XLA fallback is fine since XW is a tiny fraction of total bytes.
        xw = jnp.dot(x_p, w_p, preferred_element_type=jnp.float32
                     ).astype(jnp.bfloat16)
    else:
        xw = pl.pallas_call(
            _xw_kernel,
            out_shape=jax.ShapeDtypeStruct((n_cols_p, f_out_p), jnp.bfloat16),
            grid=(n_ct,),
            in_specs=[
                pl.BlockSpec((tk, f_in_p), lambda i: (i, 0)),
                pl.BlockSpec((f_in_p, f_out_p), lambda i: (0, 0)),  # W resident
            ],
            out_specs=pl.BlockSpec((tk, f_out_p), lambda i: (i, 0)),
            compiler_params=pltpu.CompilerParams(
                dimension_semantics=("parallel",),
                vmem_limit_bytes=vmem_limit,
            ),
        )(x_p, w_p)

    # ---- step 2: out = ReLU(A_bsr @ XW + b), reduction over nonzero blocks ----
    out_p = pl.pallas_call(
        _agg_kernel,
        out_shape=jax.ShapeDtypeStruct((n_rows_p, f_out_p), jnp.float32),
        grid_spec=pltpu.PrefetchScalarGridSpec(
            num_scalar_prefetch=3,
            grid=(n_rt, max_nnz),                       # reduction axis last
            in_specs=[
                # compacted nonzero A blocks, picked via SMEM table
                pl.BlockSpec((1, tm, tk),
                             lambda i, k, blk, col, cnt: (blk[i, k], 0, 0)),
                # matching XW column tile
                pl.BlockSpec((tk, f_out_p),
                             lambda i, k, blk, col, cnt: (col[i, k], 0)),
                # bias (resident)
                pl.BlockSpec((1, f_out_p),
                             lambda i, k, blk, col, cnt: (0, 0)),
            ],
            # output block resident across k -> it is the f32 accumulator
            out_specs=pl.BlockSpec((tm, f_out_p),
                                   lambda i, k, blk, col, cnt: (i, 0)),
        ),
        compiler_params=pltpu.CompilerParams(
            dimension_semantics=("parallel", "arbitrary"),
            vmem_limit_bytes=vmem_limit,
        ),
    )(blk_ids, col_ids, nnz, a_blocks, xw, b_p)

    return out_p[:n, :f_out]


# Name alias matching the PyTorch module's forward.
py_gconv_forward = gcn_conv_pallas


if __name__ == "__main__":
    key = jax.random.PRNGKey(0)
    N, F_IN, F_OUT = 16, 8, 8  # small graph: 16 nodes, 8 -> 8 features

    k_x, k_w = jax.random.split(key)
    x = jax.random.normal(k_x, (N, F_IN), dtype=jnp.float32)

    # GCNConv.reset_parameters(): glorot(weight), zeros(bias).
    limit = jnp.sqrt(6.0 / (F_IN + F_OUT))
    w = jax.random.uniform(k_w, (F_IN, F_OUT), minval=-limit, maxval=limit,
                           dtype=jnp.float32)
    b = jnp.zeros((F_OUT,), dtype=jnp.float32)

    # deterministic edge_index: bidirectional ring graph over N nodes
    idx = jnp.arange(N, dtype=jnp.int32)
    nxt = (idx + 1) % N
    edge_index = jnp.stack(
        [jnp.concatenate([idx, nxt]), jnp.concatenate([nxt, idx])], axis=0
    )  # [2, 2N]

    out = py_gconv_forward(x, edge_index, w, b)
    out = jax.block_until_ready(out)

    # pure-JAX f32 reference (kernel feeds bf16 to the MXU -> loose tolerance)
    a_hat = build_normalized_adjacency(edge_index, N)
    ref = jnp.maximum(a_hat @ (x @ w) + b[None, :], 0.0)
    assert out.shape == (N, F_OUT)
    assert jnp.allclose(out, ref, atol=5e-2, rtol=5e-2), (
        float(jnp.max(jnp.abs(out - ref))))

    print("KERNEL_OK")
</pallas_src>

<mosaic_0001>
module attributes {stable_mosaic.version = 11 : i64} {
  func.func @_xw_kernel(%arg0: i32, %arg1: memref<128x128xbf16, #tpu.memory_space<vmem>>, %arg2: memref<128x128xbf16, #tpu.memory_space<vmem>>, %arg3: memref<128x128xbf16, #tpu.memory_space<vmem>>) attributes {dimension_semantics = [#tpu.dimension_semantics<parallel>], iteration_bounds = array<i64: 1>, scalar_prefetch = 0 : i64, scratch_operands = 0 : i64, tpu.core_type = #tpu.core_type<tc>, window_params = [{transform_indices = @transform_0, window_bounds = array<i64: 128, 128>}, {pipeline_mode = #tpu.pipeline_mode<synchronous>, transform_indices = @transform_1, window_bounds = array<i64: 128, 128>}, {transform_indices = @transform_2, window_bounds = array<i64: 128, 128>}]} {
    %c0 = arith.constant 0 : index
    %c0_0 = arith.constant 0 : index
    %0 = vector.load %arg1[%c0, %c0_0] : memref<128x128xbf16, #tpu.memory_space<vmem>>, vector<128x128xbf16>
    %c0_1 = arith.constant 0 : index
    %c0_2 = arith.constant 0 : index
    %1 = vector.load %arg2[%c0_1, %c0_2] : memref<128x128xbf16, #tpu.memory_space<vmem>>, vector<128x128xbf16>
    %cst = arith.constant dense<0.000000e+00> : vector<128x128xf32>
    %2 = tpu.matmul %0, %1, %cst {dimension_numbers = #tpu.dot_dimension_numbers<[1], [0], [0], [1], [0, 0, 1, 1], [], []>} : vector<128x128xbf16>, vector<128x128xbf16>, vector<128x128xf32> -> vector<128x128xf32>
    %3 = arith.truncf %2 : vector<128x128xf32> to vector<128x128xbf16>
    %c0_3 = arith.constant 0 : index
    %c0_4 = arith.constant 0 : index
    %4 = vector.load %arg3[%c0_3, %c0_4] : memref<128x128xbf16, #tpu.memory_space<vmem>>, vector<128x128xbf16>
    tpu.vector_store %arg3[%c0_3, %c0_4], %3 {strides = array<i32>} : memref<128x128xbf16, #tpu.memory_space<vmem>>, vector<128x128xbf16>,
    return
  }
  func.func @transform_0(%arg0: i32) -> (i32, i32) {
    %c0_i32 = arith.constant 0 : i32
    %c0_i32_0 = arith.constant 0 : i32
    return %arg0, %c0_i32 : i32, i32
  }
  func.func @transform_1(%arg0: i32) -> (i32, i32) {
    %c0_i32 = arith.constant 0 : i32
    %c0_i32_0 = arith.constant 0 : i32
    %c0_i32_1 = arith.constant 0 : i32
    return %c0_i32, %c0_i32_0 : i32, i32
  }
  func.func @transform_2(%arg0: i32) -> (i32, i32) {
    %c0_i32 = arith.constant 0 : i32
    %c0_i32_0 = arith.constant 0 : i32
    return %arg0, %c0_i32 : i32, i32
  }
}

</mosaic_0001>

<llo_original>
// kernel: tpu_custom_call.1
$region0: #{tpu_custom_call.1}
  #allocation0 [shape = 'u32[]', space=smem, size = 0x4, offset = 0x4, fixed_abs, tag = 'smem constant byte address 0x4 - core index']
  #allocation1 [shape = 'u32[72,128]{1,0:T(1,128)}', space=vmem, size = 0x9000, scoped, tag = 'internal scratch']
  %s0 = inlined_call_operand.hbm [shape: bf16[128,128], index: 0, kind: input, shape index: {}]
  %s1 = inlined_call_operand.hbm [shape: bf16[128,128], index: 1, kind: input, shape index: {}]
  %s2 = inlined_call_operand.hbm [shape: bf16[128,128], index: 2, kind: output, shape index: {}]
  %s3 = sld [smem:[#allocation0]]
  $region26: #{tpu_custom_call.1} parent=0
    _
  %s5 = ssub.s32 1, %s3
  %s6 = scalar_select 0, %s5, %s3
  $region1: #{tpu_custom_call.1} parent=0
    #allocation2 [shape = 'u8[32768]{0}', space=vmem, size = 0x8000, scoped, tag = 'input window, operand 0, single buffered']
    #allocation3 [shape = 's32[1]{0}', space=sflag, size = 0x4, scoped, tag = 'scoped memory for tpu_custom_call.1']
    #allocation4 [shape = 's32[1]{0}', space=sflag, size = 0x4, scoped, tag = 'scoped memory for tpu_custom_call.1']
    #allocation5 [shape = 'u8[32768]{0}', space=vmem, size = 0x8000, scoped, tag = 'input window, operand 1, single buffered']
    #allocation6 [shape = 's32[1]{0}', space=sflag, size = 0x4, scoped, tag = 'scoped memory for tpu_custom_call.1']
    #allocation7 [shape = 'u8[32768]{0}', space=vmem, size = 0x8000, scoped, tag = 'output window, operand 0, single buffered']
    %7 = vsyncpa [#allocation3], 0
    %8 = vsyncpa [#allocation6], 0
    %9 = vsyncpa [#allocation4], 0
    // Predicated region
    $region2: #{tpu_custom_call.1} parent=1 // pred_check
      _
    $region3: #{tpu_custom_call.1} parent=1 // pred_check_branch
      %11 = sbr.rel (0) target = $region5
    $region4: #{tpu_custom_call.1} parent=1 // pred_region
      %13 = vsyncadd [#allocation3], 0
      %s14 = sshll.u32 %s0, 4
      %s15 = int_to_ptr.hbm [resolvable:$true] %s14
      %s16 = sshll.u32 [#allocation2], 4
      %s17 = int_to_ptr.vmem [resolvable:$true] %s16
      %22 = dma.hbm_to_vmem [thread:$0]  %s15, 1024, %s17, [#allocation3], 64, 64, 4
    $region5: #{tpu_custom_call.1} parent=1 // pred_fallthru
      _
    // Predicated region
    $region6: #{tpu_custom_call.1} parent=1 // pred_check
      _
    $region7: #{tpu_custom_call.1} parent=1 // pred_check_branch
      %24 = sbr.rel (0) target = $region9
    $region8: #{tpu_custom_call.1} parent=1 // pred_region
      %26 = vsyncadd [#allocation6], 0
      %s27 = sshll.u32 %s1, 4
      %s28 = int_to_ptr.hbm [resolvable:$true] %s27
      %s29 = sshll.u32 [#allocation5], 4
      %s30 = int_to_ptr.vmem [resolvable:$true] %s29
      %35 = dma.hbm_to_vmem [thread:$0]  %s28, 1024, %s30, [#allocation6], 64, 64, 4
    $region9: #{tpu_custom_call.1} parent=1 // pred_fallthru
      _
    // Predicated region
    $region10: #{tpu_custom_call.1} parent=1 // pred_check
      _
    $region11: #{tpu_custom_call.1} parent=1 // pred_check_branch
      %37 = sbr.rel (0) target = $region13
    $region12: #{tpu_custom_call.1} parent=1 // pred_region
      %39 = dma.done [#allocation3], 1024
    $region13: #{tpu_custom_call.1} parent=1 // pred_fallthru
      _
    // Predicated region
    $region14: #{tpu_custom_call.1} parent=1 // pred_check
      _
    $region15: #{tpu_custom_call.1} parent=1 // pred_check_branch
      %41 = sbr.rel (0) target = $region17
    $region16: #{tpu_custom_call.1} parent=1 // pred_region
      %43 = dma.done [#allocation6], 1024
    $region17: #{tpu_custom_call.1} parent=1 // pred_fallthru
      _
    %v44 = vld [vmem:[#allocation2] sm:$0xf]
    %v45 = vld [vmem:[#allocation2 + $0x4] sm:$0xf]
    %v46 = vld [vmem:[#allocation2 + $0x8] sm:$0xf]
    %v47 = vld [vmem:[#allocation2 + $0xc] sm:$0xf]
    %v48 = vld [vmem:[#allocation2 + $0x10] sm:$0xf]
    %v49 = vld [vmem:[#allocation2 + $0x14] sm:$0xf]
    %v50 = vld [vmem:[#allocation2 + $0x18] sm:$0xf]
    %v51 = vld [vmem:[#allocation2 + $0x1c] sm:$0xf]
    %v52 = vld [vmem:[#allocation2 + $0x20] sm:$0xf]
    %v53 = vld [vmem:[#allocation2 + $0x24] sm:$0xf]
    %v54 = vld [vmem:[#allocation2 + $0x28] sm:$0xf]
    %v55 = vld [vmem:[#allocation2 + $0x2c] sm:$0xf]
    %v56 = vld [vmem:[#allocation2 + $0x30] sm:$0xf]
    %v57 = vld [vmem:[#allocation2 + $0x34] sm:$0xf]
    %v58 = vld [vmem:[#allocation2 + $0x38] sm:$0xf]
    %v59 = vld [vmem:[#allocation2 + $0x3c] sm:$0xf]
    %v60 = vld [vmem:[#allocation5] sm:$0xf]
    %v61 = vld [vmem:[#allocation5 + $0x4] sm:$0xf]
    %v62 = vld [vmem:[#allocation5 + $0x8] sm:$0xf]
    %v63 = vld [vmem:[#allocation5 + $0xc] sm:$0xf]
    %v64 = vld [vmem:[#allocation5 + $0x10] sm:$0xf]
    %v65 = vld [vmem:[#allocation5 + $0x14] sm:$0xf]
    %v66 = vld [vmem:[#allocation5 + $0x18] sm:$0xf]
    %v67 = vld [vmem:[#allocation5 + $0x1c] sm:$0xf]
    %v68 = vld [vmem:[#allocation5 + $0x20] sm:$0xf]
    %v69 = vld [vmem:[#allocation5 + $0x24] sm:$0xf]
    %v70 = vld [vmem:[#allocation5 + $0x28] sm:$0xf]
    %v71 = vld [vmem:[#allocation5 + $0x2c] sm:$0xf]
    %v72 = vld [vmem:[#allocation5 + $0x30] sm:$0xf]
    %v73 = vld [vmem:[#allocation5 + $0x34] sm:$0xf]
    %v74 = vld [vmem:[#allocation5 + $0x38] sm:$0xf]
    %v75 = vld [vmem:[#allocation5 + $0x3c] sm:$0xf]
    %v92 = vunpack.c.l.b16 %v44
    %v93 = vunpack.c.l.b16 %v45
    %v94 = vunpack.c.l.b16 %v46
    %v95 = vunpack.c.l.b16 %v47
    %v96 = vunpack.c.l.b16 %v48
    %v97 = vunpack.c.l.b16 %v49
    %v98 = vunpack.c.l.b16 %v50
    %v99 = vunpack.c.l.b16 %v51
    %v100 = vunpack.c.l.b16 %v52
    %v101 = vunpack.c.l.b16 %v53
    %v102 = vunpack.c.l.b16 %v54
    %v103 = vunpack.c.l.b16 %v55
    %v104 = vunpack.c.l.b16 %v56
    %v105 = vunpack.c.l.b16 %v57
    %v106 = vunpack.c.l.b16 %v58
    %v107 = vunpack.c.l.b16 %v59
    %v108 = vpack.c.b16 %v93, %v92
    %v109 = vpack.c.b16 %v95, %v94
    %v110 = vpack.c.b16 %v97, %v96
    %v111 = vpack.c.b16 %v99, %v98
    %v112 = vpack.c.b16 %v101, %v100
    %v113 = vpack.c.b16 %v103, %v102
    %v114 = vpack.c.b16 %v105, %v104
    %v115 = vpack.c.b16 %v107, %v106
    %v140 = vunpack.c.l.b16 %v60
    %v141 = vunpack.c.l.b16 %v61
    %v142 = vunpack.c.l.b16 %v62
    %v143 = vunpack.c.l.b16 %v63
    %v144 = vunpack.c.l.b16 %v64
    %v145 = vunpack.c.l.b16 %v65
    %v146 = vunpack.c.l.b16 %v66
    %v147 = vunpack.c.l.b16 %v67
    %v148 = vunpack.c.l.b16 %v68
    %v149 = vunpack.c.l.b16 %v69
    %v150 = vunpack.c.l.b16 %v70
    %v151 = vunpack.c.l.b16 %v71
    %v152 = vunpack.c.l.b16 %v72
    %v153 = vunpack.c.l.b16 %v73
    %v154 = vunpack.c.l.b16 %v74
    %v155 = vunpack.c.l.b16 %v75
    %v156 = vpack.c.b16 %v141, %v140
    %v157 = vpack.c.b16 %v143, %v142
    %v158 = vpack.c.b16 %v145, %v144
    %v159 = vpack.c.b16 %v147, %v146
    %v160 = vpack.c.b16 %v149, %v148
    %v161 = vpack.c.b16 %v151, %v150
    %v162 = vpack.c.b16 %v153, %v152
    %v163 = vpack.c.b16 %v155, %v154
    %172 = vmatpush.bf16.msra.mxu0 %v163
    %173 = vmatpush.bf16.msra.mxu0 %v162
    %174 = vmatpush.bf16.msra.mxu0 %v161
    %175 = vmatpush.bf16.msra.mxu0 %v160
    %176 = vmatpush.bf16.msra.mxu0 %v159
    %177 = vmatpush.bf16.msra.mxu0 %v158
    %178 = vmatpush.bf16.msra.mxu0 %v157
    %179 = vmatpush.bf16.msra.mxu0 %v156
    %180 = vmatmul.bf16.gmra.mxu0 %v108
    %v181 = vpop.f32.mrf.mxu0
    %v182 = vadd.f32 0.0, %v181
    %v183 = vpop.f32.mrf.mxu0
    %v184 = vadd.f32 0.0, %v183
    %185 = vmatmul.bf16.gmra.mxu0 %v109
    %v186 = vpop.f32.mrf.mxu0
    %v187 = vadd.f32 0.0, %v186
    %v188 = vpop.f32.mrf.mxu0
    %v189 = vadd.f32 0.0, %v188
    %190 = vmatmul.bf16.gmra.mxu0 %v110
    %v191 = vpop.f32.mrf.mxu0
    %v192 = vadd.f32 0.0, %v191
    %v193 = vpop.f32.mrf.mxu0
    %v194 = vadd.f32 0.0, %v193
    %195 = vmatmul.bf16.gmra.mxu0 %v111
    %v196 = vpop.f32.mrf.mxu0
    %v197 = vadd.f32 0.0, %v196
    %v198 = vpop.f32.mrf.mxu0
    %v199 = vadd.f32 0.0, %v198
    %200 = vmatmul.bf16.gmra.mxu0 %v112
    %v201 = vpop.f32.mrf.mxu0
    %v202 = vadd.f32 0.0, %v201
    %v203 = vpop.f32.mrf.mxu0
    %v204 = vadd.f32 0.0, %v203
    %205 = vmatmul.bf16.gmra.mxu0 %v113
    %v206 = vpop.f32.mrf.mxu0
    %v207 = vadd.f32 0.0, %v206
    %v208 = vpop.f32.mrf.mxu0
    %v209 = vadd.f32 0.0, %v208
    %210 = vmatmul.bf16.gmra.mxu0 %v114
    %v211 = vpop.f32.mrf.mxu0
    %v212 = vadd.f32 0.0, %v211
    %v213 = vpop.f32.mrf.mxu0
    %v214 = vadd.f32 0.0, %v213
    %215 = vmatmul.bf16.gmra.mxu0 %v115
    %v216 = vpop.f32.mrf.mxu0
    %v217 = vadd.f32 0.0, %v216
    %v218 = vpop.f32.mrf.mxu0
    %v219 = vadd.f32 0.0, %v218
    %220 = vdwg.mxu0
    %v221 = vpack.c.bf16 %v182, %v182
    %v222 = vpack.c.bf16 %v184, %v184
    %v223 = vpack.c.bf16 %v187, %v187
    %v224 = vpack.c.bf16 %v189, %v189
    %v225 = vpack.c.bf16 %v192, %v192
    %v226 = vpack.c.bf16 %v194, %v194
    %v227 = vpack.c.bf16 %v197, %v197
    %v228 = vpack.c.bf16 %v199, %v199
    %v229 = vpack.c.bf16 %v202, %v202
    %v230 = vpack.c.bf16 %v204, %v204
    %v231 = vpack.c.bf16 %v207, %v207
    %v232 = vpack.c.bf16 %v209, %v209
    %v233 = vpack.c.bf16 %v212, %v212
    %v234 = vpack.c.bf16 %v214, %v214
    %v235 = vpack.c.bf16 %v217, %v217
    %v236 = vpack.c.bf16 %v219, %v219
    %237 = vst [vmem:[#allocation7] sm:$0xf] %v221
    %238 = vst [vmem:[#allocation7 + $0x4] sm:$0xf] %v222
    %239 = vst [vmem:[#allocation7 + $0x8] sm:$0xf] %v223
    %240 = vst [vmem:[#allocation7 + $0xc] sm:$0xf] %v224
    %241 = vst [vmem:[#allocation7 + $0x10] sm:$0xf] %v225
    %242 = vst [vmem:[#allocation7 + $0x14] sm:$0xf] %v226
    %243 = vst [vmem:[#allocation7 + $0x18] sm:$0xf] %v227
    %244 = vst [vmem:[#allocation7 + $0x1c] sm:$0xf] %v228
    %245 = vst [vmem:[#allocation7 + $0x20] sm:$0xf] %v229
    %246 = vst [vmem:[#allocation7 + $0x24] sm:$0xf] %v230
    %247 = vst [vmem:[#allocation7 + $0x28] sm:$0xf] %v231
    %248 = vst [vmem:[#allocation7 + $0x2c] sm:$0xf] %v232
    %249 = vst [vmem:[#allocation7 + $0x30] sm:$0xf] %v233
    %250 = vst [vmem:[#allocation7 + $0x34] sm:$0xf] %v234
    %251 = vst [vmem:[#allocation7 + $0x38] sm:$0xf] %v235
    %252 = vst [vmem:[#allocation7 + $0x3c] sm:$0xf] %v236
    // Predicated region
    $region18: #{tpu_custom_call.1} parent=1 // pred_check
      _
    $region19: #{tpu_custom_call.1} parent=1 // pred_check_branch
      %254 = sbr.rel (0) target = $region21
    $region20: #{tpu_custom_call.1} parent=1 // pred_region
      %256 = vsyncadd [#allocation4], 0
      %s257 = sshll.u32 [#allocation7], 4
      %s258 = int_to_ptr.vmem [resolvable:$true] %s257
      %s259 = sshll.u32 %s2, 4
      %s260 = int_to_ptr.hbm [resolvable:$true] %s259
      %265 = dma.vmem_to_hbm [thread:$0]  %s258, 1024, %s260, [#allocation4], 64, 64, 4
    $region21: #{tpu_custom_call.1} parent=1 // pred_fallthru
      _
    // Predicated region
    $region22: #{tpu_custom_call.1} parent=1 // pred_check
      _
    $region23: #{tpu_custom_call.1} parent=1 // pred_check_branch
      %267 = sbr.rel (0) target = $region25
    $region24: #{tpu_custom_call.1} parent=1 // pred_region
      %269 = dma.done [#allocation4], 1024
    $region25: #{tpu_custom_call.1} parent=1 // pred_fallthru
      _
    %270 = vsyncpa [#allocation3], 1
    %271 = vsyncpa [#allocation6], 1
    %272 = vsyncpa [#allocation4], 1

</llo_original>
